<compile_context>
chip_gen: v5e
topology: v5e:2x2
jax: 0.10.0
libtpu: 0.0.40
codegen_flags: <defaults>
</compile_context>

<pallas_src>
import functools

import jax
import jax.numpy as jnp
from jax.experimental import pallas as pl
from jax.experimental.pallas import tpu as pltpu

# ----------------------------- configuration ------------------------------
B = 2            # batch
S = 16           # sequence / num objects
IN_DIM = 32      # in_dim
INNER_DIM = 128  # inner_dim (lane-dense: exactly one 128-lane output tile)


# ------------------------------ fused kernel -------------------------------
def _gated_nlt_kernel(x_ref, w_ref, b_ref, o_ref, *, inner_dim):
    # Single MXU pass producing BOTH branches: h = x @ [W1 | W2] + [b1 | b2]
    h = (
        jnp.dot(x_ref[...], w_ref[...], preferred_element_type=jnp.float32)
        + b_ref[...]
    )
    # Static, lane-tile-aligned split (at column 128) -> no copies.
    y = jnp.tanh(h[:, :inner_dim])   # tanh(fc1(x))   (EUP)
    g = jnp.tanh(h[:, inner_dim:])   # tanh(fc2(x))   (EUP)
    o_ref[...] = (g * y).astype(o_ref.dtype)   # gate (VPU), 128-wide unmasked store


# --------------------------- one-time param packing -------------------------
def pack_gated_nlt_params(w1, b1, w2, b2):
    """Pack fc1/fc2 into a single (in_dim, 2*inner) weight and (1, 2*inner) bias.

    Call ONCE at module init; keep the packed params and reuse them per call,
    so no concat ops land on the per-forward critical path.
    """
    w_cat = jnp.concatenate([w1, w2], axis=1)                    # (in_dim, 2*inner)
    b_cat = jnp.concatenate([b1, b2]).reshape(1, -1)             # (1, 2*inner)
    return w_cat, b_cat


# ------------------------------ wrapper -------------------------------------
def gated_nlt(x, w_cat, b_cat, *, row_tile=256):
    """x: (..., in_dim); w_cat: (in_dim, 2*inner); b_cat: (1, 2*inner)."""
    *lead, in_dim = x.shape
    two_inner = w_cat.shape[1]
    inner = two_inner // 2

    m = 1
    for d in lead:
        m *= d
    x2d = x.reshape(m, in_dim)

    kernel = functools.partial(_gated_nlt_kernel, inner_dim=inner)
    cost = pl.CostEstimate(
        flops=2 * m * in_dim * two_inner,
        transcendentals=2 * m * inner,
        bytes_accessed=4 * (m * in_dim + in_dim * two_inner + two_inner + m * inner),
    )

    if m <= row_tile:
        # Small path: no grid, no pipelining machinery — whole problem in VMEM.
        out = pl.pallas_call(
            kernel,
            out_shape=jax.ShapeDtypeStruct((m, inner), jnp.float32),
            in_specs=[
                pl.BlockSpec(memory_space=pltpu.MemorySpace.VMEM),
                pl.BlockSpec(memory_space=pltpu.MemorySpace.VMEM),
                pl.BlockSpec(memory_space=pltpu.MemorySpace.VMEM),
            ],
            out_specs=pl.BlockSpec(memory_space=pltpu.MemorySpace.VMEM),
            cost_estimate=cost,
        )(x2d, w_cat, b_cat)
    else:
        # Batched path: tile rows, keep packed weights/bias resident in VMEM
        # (constant index_map), mark the M axis parallel (both v7x TCs).
        tm = row_tile
        m_pad = pl.cdiv(m, tm) * tm
        if m_pad != m:
            x2d = jnp.pad(x2d, ((0, m_pad - m), (0, 0)))
        out = pl.pallas_call(
            kernel,
            grid=(m_pad // tm,),
            out_shape=jax.ShapeDtypeStruct((m_pad, inner), jnp.float32),
            in_specs=[
                pl.BlockSpec((tm, in_dim), lambda i: (i, 0)),
                pl.BlockSpec((in_dim, two_inner), lambda i: (0, 0)),
                pl.BlockSpec((1, two_inner), lambda i: (0, 0)),
            ],
            out_specs=pl.BlockSpec((tm, inner), lambda i: (i, 0)),
            compiler_params=pltpu.CompilerParams(
                dimension_semantics=("parallel",)
            ),
            cost_estimate=cost,
        )(x2d, w_cat, b_cat)
        out = out[:m]

    return out.reshape(*lead, inner)


# ------------------------- pure-JAX reference -------------------------------
def reference(x, w1, b1, w2, b2):
    y = jnp.tanh(x @ w1 + b1)
    g = jnp.tanh(x @ w2 + b2)
    return g * y


# --------------------------------- main --------------------------------------
if __name__ == "__main__":
    key = jax.random.PRNGKey(0)
    kx, kw1, kb1, kw2, kb2, kx2 = jax.random.split(key, 6)

    w1 = jax.random.normal(kw1, (IN_DIM, INNER_DIM), jnp.float32) * 0.1
    b1 = jax.random.normal(kb1, (INNER_DIM,), jnp.float32) * 0.1
    w2 = jax.random.normal(kw2, (IN_DIM, INNER_DIM), jnp.float32) * 0.1
    b2 = jax.random.normal(kb2, (INNER_DIM,), jnp.float32) * 0.1

    # "Module init": pack params once, outside the per-call path.
    w_cat, b_cat = pack_gated_nlt_params(w1, b1, w2, b2)
    w_cat, b_cat = jax.block_until_ready((w_cat, b_cat))

    # Small-shape path (no grid): B=2, S=16, in_dim=32.
    x = jax.random.normal(kx, (B, S, IN_DIM), jnp.float32)
    out = gated_nlt(x, w_cat, b_cat)
    out = jax.block_until_ready(out)
    ref = reference(x, w1, b1, w2, b2)
    assert out.shape == (B, S, INNER_DIM)
    assert jnp.allclose(out, ref, atol=1e-5, rtol=1e-5)

    # Batched path (row-tiled grid, weights resident): B=4, S=130 -> M=520
    # (deliberately not a multiple of the tile to exercise padding).
    x_big = jax.random.normal(kx2, (4, 130, IN_DIM), jnp.float32)
    out_big = gated_nlt(x_big, w_cat, b_cat, row_tile=256)
    out_big = jax.block_until_ready(out_big)
    ref_big = reference(x_big, w1, b1, w2, b2)
    assert out_big.shape == (4, 130, INNER_DIM)
    assert jnp.allclose(out_big, ref_big, atol=1e-5, rtol=1e-5)

    print("KERNEL_OK")
</pallas_src>

<mosaic_0001>
module attributes {stable_mosaic.version = 11 : i64} {
  func.func @_gated_nlt_kernel(%arg0: memref<32x32xf32, #tpu.memory_space<vmem>>, %arg1: memref<32x256xf32, #tpu.memory_space<vmem>>, %arg2: memref<1x256xf32, #tpu.memory_space<vmem>>, %arg3: memref<32x128xf32, #tpu.memory_space<vmem>>) attributes {dimension_semantics = [], scalar_prefetch = 0 : i64, scratch_operands = 0 : i64, tpu.core_type = #tpu.core_type<tc>} {
    %c0 = arith.constant 0 : index
    %c0_0 = arith.constant 0 : index
    %0 = vector.load %arg0[%c0, %c0_0] : memref<32x32xf32, #tpu.memory_space<vmem>>, vector<32x32xf32>
    %c0_1 = arith.constant 0 : index
    %c0_2 = arith.constant 0 : index
    %1 = vector.load %arg1[%c0_1, %c0_2] : memref<32x256xf32, #tpu.memory_space<vmem>>, vector<32x256xf32>
    %cst = arith.constant dense<0.000000e+00> : vector<32x256xf32>
    %2 = tpu.matmul %0, %1, %cst {dimension_numbers = #tpu.dot_dimension_numbers<[1], [0], [0], [1], [0, 0, 1, 1], [], []>} : vector<32x32xf32>, vector<32x256xf32>, vector<32x256xf32> -> vector<32x256xf32>
    %c0_3 = arith.constant 0 : index
    %c0_4 = arith.constant 0 : index
    %3 = vector.load %arg2[%c0_3, %c0_4] : memref<1x256xf32, #tpu.memory_space<vmem>>, vector<1x256xf32>
    %4 = vector.broadcast %3 : vector<1x256xf32> to vector<32x256xf32>
    %5 = arith.addf %2, %4 : vector<32x256xf32>
    %6 = vector.extract_strided_slice %5 {offsets = [0, 0], sizes = [32, 128], strides = [1, 1]} : vector<32x256xf32> to vector<32x128xf32>
    %7 = math.tanh %6 : vector<32x128xf32>
    %8 = vector.extract_strided_slice %5 {offsets = [0, 128], sizes = [32, 128], strides = [1, 1]} : vector<32x256xf32> to vector<32x128xf32>
    %9 = math.tanh %8 : vector<32x128xf32>
    %10 = arith.mulf %9, %7 : vector<32x128xf32>
    %c0_5 = arith.constant 0 : index
    %c0_6 = arith.constant 0 : index
    %11 = vector.load %arg3[%c0_5, %c0_6] : memref<32x128xf32, #tpu.memory_space<vmem>>, vector<32x128xf32>
    tpu.vector_store %arg3[%c0_5, %c0_6], %10 {strides = array<i32>} : memref<32x128xf32, #tpu.memory_space<vmem>>, vector<32x128xf32>,
    return
  }
}

</mosaic_0001>

<llo_original>
// kernel: tpu_custom_call.1
$region0: #{tpu_custom_call.1}
  #allocation0 [shape = 'u32[]', space=smem, size = 0x4, offset = 0x4, fixed_abs, tag = 'smem constant byte address 0x4 - core index']
  #allocation1 [shape = 'u32[72,128]{1,0:T(1,128)}', space=vmem, size = 0x9000, scoped, tag = 'internal scratch']
  %s0 = inlined_call_operand.hbm [shape: f32[32,32], index: 0, kind: input, shape index: {}]
  %s1 = inlined_call_operand.hbm [shape: f32[32,256], index: 1, kind: input, shape index: {}]
  %s2 = inlined_call_operand.hbm [shape: f32[1,256], index: 2, kind: input, shape index: {}]
  %s3 = inlined_call_operand.hbm [shape: f32[32,128], index: 3, kind: output, shape index: {}]
  %s4 = sld [smem:[#allocation0]]
  $region34: #{tpu_custom_call.1} parent=0
    _
  %s6 = ssub.s32 1, %s4
  %s7 = scalar_select 0, %s6, %s4
  $region1: #{tpu_custom_call.1} parent=0
    #allocation2 [shape = 'u8[16384]{0}', space=vmem, size = 0x4000, scoped, tag = 'input window, operand 0, single buffered']
    #allocation3 [shape = 's32[1]{0}', space=sflag, size = 0x4, scoped, tag = 'scoped memory for tpu_custom_call.1']
    #allocation4 [shape = 's32[1]{0}', space=sflag, size = 0x4, scoped, tag = 'scoped memory for tpu_custom_call.1']
    #allocation5 [shape = 'u8[32768]{0}', space=vmem, size = 0x8000, scoped, tag = 'input window, operand 1, single buffered']
    #allocation6 [shape = 's32[1]{0}', space=sflag, size = 0x4, scoped, tag = 'scoped memory for tpu_custom_call.1']
    #allocation7 [shape = 'u8[1024]{0}', space=vmem, size = 0x400, scoped, tag = 'input window, operand 2, single buffered']
    #allocation8 [shape = 'u8[16384]{0}', space=vmem, size = 0x4000, scoped, tag = 'output window, operand 0, single buffered']
    %8 = vsyncpa [#allocation3], 0
    %9 = vsyncpa [#allocation6], 0
    %10 = vsyncpa [#allocation4], 0
    // Predicated region
    $region2: #{tpu_custom_call.1} parent=1 // pred_check
      _
    $region3: #{tpu_custom_call.1} parent=1 // pred_check_branch
      %12 = sbr.rel (0) target = $region5
    $region4: #{tpu_custom_call.1} parent=1 // pred_region
      %14 = vsyncadd [#allocation3], 0
      %s15 = sshll.u32 %s0, 4
      %s16 = int_to_ptr.hbm [resolvable:$true] %s15
      %s17 = sshll.u32 [#allocation2], 4
      %s18 = int_to_ptr.vmem [resolvable:$true] %s17
      %23 = dma.hbm_to_vmem [thread:$0]  %s16, 512, %s18, [#allocation3], 128, 128, 8
    $region5: #{tpu_custom_call.1} parent=1 // pred_fallthru
      _
    // Predicated region
    $region6: #{tpu_custom_call.1} parent=1 // pred_check
      _
    $region7: #{tpu_custom_call.1} parent=1 // pred_check_branch
      %25 = sbr.rel (0) target = $region9
    $region8: #{tpu_custom_call.1} parent=1 // pred_region
      %27 = vsyncadd [#allocation6], 0
      %s28 = sshll.u32 %s1, 4
      %s29 = int_to_ptr.hbm [resolvable:$true] %s28
      %s30 = sshll.u32 [#allocation5], 4
      %s31 = int_to_ptr.vmem [resolvable:$true] %s30
      %36 = dma.hbm_to_vmem [thread:$0]  %s29, 1024, %s31, [#allocation6], 256, 256, 16
    $region9: #{tpu_custom_call.1} parent=1 // pred_fallthru
      _
    // Predicated region
    $region10: #{tpu_custom_call.1} parent=1 // pred_check
      _
    $region11: #{tpu_custom_call.1} parent=1 // pred_check_branch
      %38 = sbr.rel (0) target = $region13
    $region12: #{tpu_custom_call.1} parent=1 // pred_region
      %40 = vsyncadd [#allocation6], 0
      %s42 = sshll.u32 %s2, 4
      %s43 = int_to_ptr.hbm [resolvable:$true] %s42
      %s44 = sshll.u32 [#allocation7], 4
      %s45 = int_to_ptr.vmem [resolvable:$true] %s44
      %47 = dma.hbm_to_vmem [thread:$0]  %s43, 32, %s45, [#allocation6]
    $region13: #{tpu_custom_call.1} parent=1 // pred_fallthru
      _
    // Predicated region
    $region14: #{tpu_custom_call.1} parent=1 // pred_check
      _
    $region15: #{tpu_custom_call.1} parent=1 // pred_check_branch
      %49 = sbr.rel (0) target = $region17
    $region16: #{tpu_custom_call.1} parent=1 // pred_region
      %51 = dma.done [#allocation3], 512
    $region17: #{tpu_custom_call.1} parent=1 // pred_fallthru
      _
    // Predicated region
    $region18: #{tpu_custom_call.1} parent=1 // pred_check
      _
    $region19: #{tpu_custom_call.1} parent=1 // pred_check_branch
      %53 = sbr.rel (0) target = $region21
    $region20: #{tpu_custom_call.1} parent=1 // pred_region
      %55 = dma.done [#allocation6], 1024
    $region21: #{tpu_custom_call.1} parent=1 // pred_fallthru
      _
    // Predicated region
    $region22: #{tpu_custom_call.1} parent=1 // pred_check
      _
    $region23: #{tpu_custom_call.1} parent=1 // pred_check_branch
      %57 = sbr.rel (0) target = $region25
    $region24: #{tpu_custom_call.1} parent=1 // pred_region
      %59 = dma.done [#allocation6], 32
    $region25: #{tpu_custom_call.1} parent=1 // pred_fallthru
      _
    %v60 = vld [vmem:[#allocation2] sm:$0xff]
    %v61 = vld [vmem:[#allocation2 + $0x8] sm:$0xff]
    %v62 = vld [vmem:[#allocation2 + $0x10] sm:$0xff]
    %v63 = vld [vmem:[#allocation2 + $0x18] sm:$0xff]
    %v64 = vld [vmem:[#allocation5] sm:$0xff]
    %v65 = vld [vmem:[#allocation5 + $0x8] sm:$0xff]
    %v66 = vld [vmem:[#allocation5 + $0x10] sm:$0xff]
    %v67 = vld [vmem:[#allocation5 + $0x18] sm:$0xff]
    %v68 = vld [vmem:[#allocation5 + $0x20] sm:$0xff]
    %v69 = vld [vmem:[#allocation5 + $0x28] sm:$0xff]
    %v70 = vld [vmem:[#allocation5 + $0x30] sm:$0xff]
    %v71 = vld [vmem:[#allocation5 + $0x38] sm:$0xff]
    %v72 = vld [vmem:[#allocation7] sm:$0x3]
    %v74 = vperm.slane %v72, 0
    %v75 = vperm.slane %v72, 1
    %vm78 = vcmask 261120
    %v80 = vsel %vm78, %v60, 0
    %v83 = vsel %vm78, %v61, 0
    %v86 = vsel %vm78, %v62, 0
    %v89 = vsel %vm78, %v63, 0
    %91 = vmatpush.msra.mxu0 0.0
    %92 = vmatpush.msra.mxu0 0.0
    %93 = vmatpush.msra.mxu0 0.0
    %94 = vmatpush.msra.mxu0 0.0
    %95 = vmatpush.msra.mxu0 0.0
    %96 = vmatpush.msra.mxu0 0.0
    %97 = vmatpush.msra.mxu0 0.0
    %98 = vmatpush.msra.mxu0 0.0
    %99 = vmatpush.msra.mxu0 0.0
    %100 = vmatpush.msra.mxu0 0.0
    %101 = vmatpush.msra.mxu0 0.0
    %102 = vmatpush.msra.mxu0 0.0
    %103 = vmatpush.msra.mxu0 %v70
    %104 = vmatpush.msra.mxu0 %v68
    %105 = vmatpush.msra.mxu0 %v66
    %106 = vmatpush.msra.mxu0 %v64
    %107 = vmatmul.f32.gmra.mxu0 %v80
    %v108 = vpop.f32.mrf.mxu0
    %v109 = vadd.f32 %v74, %v108
    %110 = vmatmul.f32.gmra.mxu0 %v83
    %v111 = vpop.f32.mrf.mxu0
    %v112 = vadd.f32 %v74, %v111
    %113 = vmatmul.f32.gmra.mxu0 %v86
    %v114 = vpop.f32.mrf.mxu0
    %v115 = vadd.f32 %v74, %v114
    %116 = vmatmul.f32.gmra.mxu0 %v89
    %v117 = vpop.f32.mrf.mxu0
    %v118 = vadd.f32 %v74, %v117
    %119 = vdwg.mxu0
    %120 = vmatpush.msra.mxu0 0.0
    %121 = vmatpush.msra.mxu0 0.0
    %122 = vmatpush.msra.mxu0 0.0
    %123 = vmatpush.msra.mxu0 0.0
    %124 = vmatpush.msra.mxu0 0.0
    %125 = vmatpush.msra.mxu0 0.0
    %126 = vmatpush.msra.mxu0 0.0
    %127 = vmatpush.msra.mxu0 0.0
    %128 = vmatpush.msra.mxu0 0.0
    %129 = vmatpush.msra.mxu0 0.0
    %130 = vmatpush.msra.mxu0 0.0
    %131 = vmatpush.msra.mxu0 0.0
    %132 = vmatpush.msra.mxu0 %v71
    %133 = vmatpush.msra.mxu0 %v69
    %134 = vmatpush.msra.mxu0 %v67
    %135 = vmatpush.msra.mxu0 %v65
    %136 = vmatmul.f32.gmra.mxu0 %v80
    %v137 = vpop.f32.mrf.mxu0
    %v138 = vadd.f32 %v75, %v137
    %139 = vmatmul.f32.gmra.mxu0 %v83
    %v140 = vpop.f32.mrf.mxu0
    %v141 = vadd.f32 %v75, %v140
    %142 = vmatmul.f32.gmra.mxu0 %v86
    %v143 = vpop.f32.mrf.mxu0
    %v144 = vadd.f32 %v75, %v143
    %145 = vmatmul.f32.gmra.mxu0 %v89
    %v146 = vpop.f32.mrf.mxu0
    %v147 = vadd.f32 %v75, %v146
    %148 = vdwg.mxu0
    %v149 = vtanh.pop %v109
    %v150 = vtanh.pop %v112
    %v151 = vtanh.pop %v115
    %v152 = vtanh.pop %v118
    %v153 = vtanh.pop %v138
    %v154 = vtanh.pop %v141
    %v155 = vtanh.pop %v144
    %v156 = vtanh.pop %v147
    %v157 = vmul.f32 %v153, %v149
    %v158 = vmul.f32 %v154, %v150
    %v159 = vmul.f32 %v155, %v151
    %v160 = vmul.f32 %v156, %v152
    %161 = vst [vmem:[#allocation8] sm:$0xff] %v157
    %162 = vst [vmem:[#allocation8 + $0x8] sm:$0xff] %v158
    %163 = vst [vmem:[#allocation8 + $0x10] sm:$0xff] %v159
    %164 = vst [vmem:[#allocation8 + $0x18] sm:$0xff] %v160
    // Predicated region
    $region26: #{tpu_custom_call.1} parent=1 // pred_check
      _
    $region27: #{tpu_custom_call.1} parent=1 // pred_check_branch
      %166 = sbr.rel (0) target = $region29
    $region28: #{tpu_custom_call.1} parent=1 // pred_region
      %168 = vsyncadd [#allocation4], 0
      %s169 = sshll.u32 [#allocation8], 4
      %s170 = int_to_ptr.vmem [resolvable:$true] %s169
      %s171 = sshll.u32 %s3, 4
      %s172 = int_to_ptr.hbm [resolvable:$true] %s171
      %177 = dma.vmem_to_hbm [thread:$0]  %s170, 512, %s172, [#allocation4], 128, 128, 8
    $region29: #{tpu_custom_call.1} parent=1 // pred_fallthru
      _
    // Predicated region
    $region30: #{tpu_custom_call.1} parent=1 // pred_check
      _
    $region31: #{tpu_custom_call.1} parent=1 // pred_check_branch
      %179 = sbr.rel (0) target = $region33
    $region32: #{tpu_custom_call.1} parent=1 // pred_region
      %181 = dma.done [#allocation4], 512
    $region33: #{tpu_custom_call.1} parent=1 // pred_fallthru
      _
    %182 = vsyncpa [#allocation3], 1
    %183 = vsyncpa [#allocation6], 1
    %184 = vsyncpa [#allocation4], 1

</llo_original>
